<compile_context>
chip_gen: v7x
topology: tpu7x:2x2x1
jax: 0.10.0
libtpu: 0.0.40
codegen_flags: <defaults>
</compile_context>

<pallas_src>
import functools

import jax
import jax.numpy as jnp
from jax.experimental import pallas as pl
from jax.experimental.pallas import tpu as pltpu


def _round_up(n, m):
    return ((n + m - 1) // m) * m


def _vmem_capacity_bytes():
    """Physical VMEM per TensorCore; conservative fallback if the query fails."""
    try:
        return int(pltpu.get_tpu_info().vmem_capacity_bytes)
    except Exception:
        return 64 * 1024 * 1024  # v7x per-TC capacity (smallest of v5e/v6e/v7x)


def _stable_sigmoid(x):
    # sigmoid(x) = where(x >= 0, 1/(1+exp(-x)), exp(x)/(1+exp(x))).
    # exp argument is always <= 0 -> never overflows to inf.
    z = jnp.exp(-jnp.abs(x))                       # EUP
    s = pl.reciprocal(1.0 + z, approx=True)        # EUP, arg in [1, 2]
    return jnp.where(x >= 0, s, 1.0 - s)           # VPU select


def _invariant_spec(shape):
    """BlockSpec for a grid-invariant operand: single-buffered (Buffered(1)) since
    double-buffering a weight that never changes across the grid only wastes VMEM."""
    index_map = lambda *_: (0,) * len(shape)
    try:
        return pl.BlockSpec(shape, index_map, pipeline_mode=pl.Buffered(1))
    except TypeError:  # older jax without the pipeline_mode kwarg
        return pl.BlockSpec(shape, index_map)


# ----------------------------------------------------------------------------
# Fused path: all three weight matrices resident in VMEM, grid over batch only.
# ----------------------------------------------------------------------------
def _head_kernel(x_ref, w1_ref, b1_ref, w2_ref, b2_ref, w3_ref, b3_ref, o_ref):
    # fc1: bf16 x bf16 -> f32 accumulation on the MXU, f32 bias add on the VPU.
    h = jnp.dot(x_ref[...], w1_ref[...], preferred_element_type=jnp.float32)
    h = h + b1_ref[...]
    # fc2
    h = jnp.dot(h.astype(w2_ref.dtype), w2_ref[...],
                preferred_element_type=jnp.float32)
    h = h + b2_ref[...]
    # fc3 (label dim lane-padded -> full-width MXU result, unmasked stores)
    logits = jnp.dot(h.astype(w3_ref.dtype), w3_ref[...],
                     preferred_element_type=jnp.float32)
    logits = logits + b3_ref[...]
    o_ref[...] = _stable_sigmoid(logits).astype(o_ref.dtype)


def _fused_head(x, w1, b1, w2, b2, w3, b3, *, tile_b, out_dtype, vmem_limit):
    Bp, H = x.shape
    Lp = w3.shape[1]
    return pl.pallas_call(
        _head_kernel,
        out_shape=jax.ShapeDtypeStruct((Bp, Lp), out_dtype),
        grid_spec=pltpu.PrefetchScalarGridSpec(
            num_scalar_prefetch=0,
            grid=(Bp // tile_b,),
            in_specs=[
                pl.BlockSpec((tile_b, H), lambda i: (i, 0)),  # x tile (streamed)
                _invariant_spec((H, H)),                      # w1
                _invariant_spec((1, H)),                      # b1
                _invariant_spec((H, H)),                      # w2
                _invariant_spec((1, H)),                      # b2
                _invariant_spec((H, Lp)),                     # w3 (lane-padded)
                _invariant_spec((1, Lp)),                     # b3
            ],
            out_specs=pl.BlockSpec((tile_b, Lp), lambda i: (i, 0)),
        ),
        compiler_params=pltpu.CompilerParams(
            dimension_semantics=("parallel",),
            vmem_limit_bytes=int(vmem_limit),
        ),
    )(x, w1, b1, w2, b2, w3, b3)


# ----------------------------------------------------------------------------
# Large-H fallback: per-layer K/N-tiled matmul with an f32 VMEM accumulator.
# Used when the resident-weight footprint does not fit the VMEM budget
# (e.g. H >= ~3K bf16 on v7x's 64 MiB per-TC VMEM).
# ----------------------------------------------------------------------------
def _linear_kernel(x_ref, w_ref, b_ref, o_ref, acc_ref, *, apply_sigmoid):
    k = pl.program_id(2)

    @pl.when(k == 0)
    def _():
        acc_ref[...] = jnp.zeros_like(acc_ref)

    acc_ref[...] += jnp.dot(x_ref[...], w_ref[...],
                            preferred_element_type=jnp.float32)

    @pl.when(k == pl.num_programs(2) - 1)
    def _():
        r = acc_ref[...] + b_ref[...]
        if apply_sigmoid:
            r = _stable_sigmoid(r)
        o_ref[...] = r.astype(o_ref.dtype)


def _pick_tile(dim, candidates=(512, 256, 128)):
    for c in candidates:
        if dim % c == 0:
            return c
    return dim  # full extent (block == full array dim is always legal)


def _tiled_linear(x, w, b, *, apply_sigmoid, out_dtype, tm, budget):
    M, K = x.shape
    N = w.shape[1]
    tk = _pick_tile(K)
    tn = _pick_tile(N)
    w_item = jnp.dtype(w.dtype).itemsize
    o_item = jnp.dtype(out_dtype).itemsize
    need = (2 * (tm * tk + tk * tn) * w_item   # double-buffered x / w tiles
            + 2 * tm * tn * o_item             # double-buffered out tile
            + tm * tn * 4                      # f32 accumulator scratch
            + 2 * tn * 4                       # bias tile
            + (2 << 20))                       # compiler headroom
    vmem_limit = int(min(budget, max(need, 32 << 20)))

    kern = functools.partial(_linear_kernel, apply_sigmoid=apply_sigmoid)
    return pl.pallas_call(
        kern,
        out_shape=jax.ShapeDtypeStruct((M, N), out_dtype),
        grid_spec=pltpu.PrefetchScalarGridSpec(
            num_scalar_prefetch=0,
            grid=(M // tm, N // tn, K // tk),
            in_specs=[
                pl.BlockSpec((tm, tk), lambda i, j, k: (i, k)),
                pl.BlockSpec((tk, tn), lambda i, j, k: (k, j)),
                pl.BlockSpec((1, tn), lambda i, j, k: (0, j)),
            ],
            out_specs=pl.BlockSpec((tm, tn), lambda i, j, k: (i, j)),
            scratch_shapes=[pltpu.VMEM((tm, tn), jnp.float32)],
        ),
        compiler_params=pltpu.CompilerParams(
            dimension_semantics=("parallel", "parallel", "arbitrary"),
            vmem_limit_bytes=vmem_limit,
        ),
    )(x, w, b)


# ----------------------------------------------------------------------------
# Wrapper
# ----------------------------------------------------------------------------
def prepare_params(w1, b1, w2, b2, w3, b3, *, compute_dtype=jnp.bfloat16):
    """One-time weight preprocessing (hoisted out of the per-call hot path):
    pad the label dim to a full multiple of 128 lanes and cast matmul operands to
    the compute dtype. Biases stay f32 for the epilogue."""
    L = w3.shape[1]
    Lp = _round_up(max(L, 128), 128)
    if Lp != L:
        w3 = jnp.pad(w3, ((0, 0), (0, Lp - L)))
        b3 = jnp.pad(b3, ((0, 0), (0, Lp - L)))
    return {
        "w1": w1.astype(compute_dtype), "b1": b1.astype(jnp.float32),
        "w2": w2.astype(compute_dtype), "b2": b2.astype(jnp.float32),
        "w3": w3.astype(compute_dtype), "b3": b3.astype(jnp.float32),
        "num_labels": L,
    }


def multilabel_classification_head(x, params, *, tile_b=None,
                                   out_dtype=jnp.bfloat16,
                                   force_layerwise=False):
    """x: (B, H). params: output of prepare_params(). Returns (B, num_labels)."""
    w1, b1 = params["w1"], params["b1"]
    w2, b2 = params["w2"], params["b2"]
    w3, b3 = params["w3"], params["b3"]
    L = params["num_labels"]
    B, H = x.shape
    Lp = w3.shape[1]
    w_item = jnp.dtype(w1.dtype).itemsize
    o_item = jnp.dtype(out_dtype).itemsize

    cap = _vmem_capacity_bytes()
    budget = cap - 6 * 1024 * 1024  # leave headroom below physical VMEM

    # Batch tile: 256 matches the 2x256^2 MXU on v6e/v7x; clamp to the (padded)
    # batch so tiny batches don't pad to a huge tile.
    if tile_b is None:
        tile_b = 256
    tile_b = int(max(8, min(tile_b, _round_up(B, 8))))

    def _fused_vmem(tb):
        # Weights/biases single-buffered (Buffered(1)); x/out double-buffered;
        # f32 intermediates h/logits plus their bf16 cast copies.
        resident = (2 * H * H + H * Lp) * w_item + (2 * H + Lp) * 4
        streamed = 2 * tb * (H * w_item + Lp * o_item)
        scratch = tb * (2 * H * 4 + 2 * H * w_item + Lp * 4)
        return resident + streamed + scratch + (2 << 20)

    use_fused = (not force_layerwise) and _fused_vmem(tile_b) <= budget
    if (not use_fused) and (not force_layerwise) and _fused_vmem(128) <= budget:
        tile_b = min(tile_b, 128)
        use_fused = True

    Bp = _round_up(B, tile_b)
    xc = x.astype(w1.dtype)
    if Bp != B:
        xc = jnp.pad(xc, ((0, Bp - B), (0, 0)))

    if use_fused:
        vmem_limit = min(budget, max(_fused_vmem(tile_b), 32 << 20))
        out = _fused_head(xc, w1, b1, w2, b2, w3, b3, tile_b=tile_b,
                          out_dtype=out_dtype, vmem_limit=vmem_limit)
    else:
        # Weights cannot all stay resident: stream weight tiles with a K/N grid
        # and an f32 accumulator, one pallas_call per layer.
        h = _tiled_linear(xc, w1, b1, apply_sigmoid=False, out_dtype=w1.dtype,
                          tm=tile_b, budget=budget)
        h = _tiled_linear(h, w2, b2, apply_sigmoid=False, out_dtype=w2.dtype,
                          tm=tile_b, budget=budget)
        out = _tiled_linear(h, w3, b3, apply_sigmoid=True, out_dtype=out_dtype,
                            tm=tile_b, budget=budget)

    return out[:B, :L]


def init_params(key, hidden_size, num_labels, dtype=jnp.float32):
    """Deterministic synthetic parameters (PyTorch Linear shapes, transposed for x@W)."""
    ks = jax.random.split(key, 6)
    scale = 1.0 / jnp.sqrt(jnp.asarray(hidden_size, dtype))
    # PyTorch weight shapes: (out, in). Transpose to (in, out) for x @ W.
    w1 = (jax.random.uniform(ks[0], (hidden_size, hidden_size), dtype, -1, 1) * scale).T
    b1 = (jax.random.uniform(ks[1], (hidden_size,), dtype, -1, 1) * scale).reshape(1, hidden_size)
    w2 = (jax.random.uniform(ks[2], (hidden_size, hidden_size), dtype, -1, 1) * scale).T
    b2 = (jax.random.uniform(ks[3], (hidden_size,), dtype, -1, 1) * scale).reshape(1, hidden_size)
    w3 = (jax.random.uniform(ks[4], (num_labels, hidden_size), dtype, -1, 1) * scale).T
    b3 = (jax.random.uniform(ks[5], (num_labels,), dtype, -1, 1) * scale).reshape(1, num_labels)
    return w1, b1, w2, b2, w3, b3


if __name__ == "__main__":
    batch = 8
    hidden_size = 256
    num_labels = 16

    key = jax.random.PRNGKey(0)
    k_x, k_p = jax.random.split(key)
    x = jax.random.normal(k_x, (batch, hidden_size), jnp.float32)
    w1, b1, w2, b2, w3, b3 = init_params(k_p, hidden_size, num_labels)

    # One-time preprocessing (pad labels to 128 lanes, cast weights to bf16).
    params = prepare_params(w1, b1, w2, b2, w3, b3)

    # Pure-f32 JAX reference. Kernel uses bf16 matmul operands (f32 accumulation),
    # an approximate EUP reciprocal, and a bf16 output -> bf16-level tolerance.
    ref = x @ w1 + b1
    ref = ref @ w2 + b2
    ref = ref @ w3 + b3
    ref = jax.nn.sigmoid(ref)

    # Fused (weights-resident) path.
    out = multilabel_classification_head(x, params)
    out = jax.block_until_ready(out)
    assert out.shape == (batch, num_labels)
    assert jnp.allclose(out.astype(jnp.float32), ref, atol=2e-2, rtol=2e-2), \
        "fused path mismatch vs reference"

    # Exercise the large-H fallback (chained K/N-tiled matmuls) at small shapes too.
    out_lw = multilabel_classification_head(x, params, force_layerwise=True)
    out_lw = jax.block_until_ready(out_lw)
    assert out_lw.shape == (batch, num_labels)
    assert jnp.allclose(out_lw.astype(jnp.float32), ref, atol=2e-2, rtol=2e-2), \
        "layerwise path mismatch vs reference"

    print("KERNEL_OK")
</pallas_src>

<mosaic_0001>
module attributes {stable_mosaic.version = 11 : i64} {
  func.func @_head_kernel(%arg0: i32, %arg1: memref<8x256xbf16, #tpu.memory_space<vmem>>, %arg2: memref<256x256xbf16, #tpu.memory_space<vmem>>, %arg3: memref<1x256xf32, #tpu.memory_space<vmem>>, %arg4: memref<256x256xbf16, #tpu.memory_space<vmem>>, %arg5: memref<1x256xf32, #tpu.memory_space<vmem>>, %arg6: memref<256x128xbf16, #tpu.memory_space<vmem>>, %arg7: memref<1x128xf32, #tpu.memory_space<vmem>>, %arg8: memref<8x128xbf16, #tpu.memory_space<vmem>>) attributes {dimension_semantics = [#tpu.dimension_semantics<parallel>], iteration_bounds = array<i64: 1>, scalar_prefetch = 0 : i64, scratch_operands = 0 : i64, tpu.core_type = #tpu.core_type<tc>, window_params = [{transform_indices = @transform_0, window_bounds = array<i64: 8, 256>}, {pipeline_mode = #tpu.pipeline_mode<synchronous>, transform_indices = @transform_1, window_bounds = array<i64: 256, 256>}, {pipeline_mode = #tpu.pipeline_mode<synchronous>, transform_indices = @transform_2, window_bounds = array<i64: 1, 256>}, {pipeline_mode = #tpu.pipeline_mode<synchronous>, transform_indices = @transform_3, window_bounds = array<i64: 256, 256>}, {pipeline_mode = #tpu.pipeline_mode<synchronous>, transform_indices = @transform_4, window_bounds = array<i64: 1, 256>}, {pipeline_mode = #tpu.pipeline_mode<synchronous>, transform_indices = @transform_5, window_bounds = array<i64: 256, 128>}, {pipeline_mode = #tpu.pipeline_mode<synchronous>, transform_indices = @transform_6, window_bounds = array<i64: 1, 128>}, {transform_indices = @transform_7, window_bounds = array<i64: 8, 128>}]} {
    %c0 = arith.constant 0 : index
    %c0_0 = arith.constant 0 : index
    %0 = vector.load %arg1[%c0, %c0_0] : memref<8x256xbf16, #tpu.memory_space<vmem>>, vector<8x256xbf16>
    %c0_1 = arith.constant 0 : index
    %c0_2 = arith.constant 0 : index
    %1 = vector.load %arg2[%c0_1, %c0_2] : memref<256x256xbf16, #tpu.memory_space<vmem>>, vector<256x256xbf16>
    %cst = arith.constant dense<0.000000e+00> : vector<8x256xf32>
    %2 = tpu.matmul %0, %1, %cst {dimension_numbers = #tpu.dot_dimension_numbers<[1], [0], [0], [1], [0, 0, 1, 1], [], []>} : vector<8x256xbf16>, vector<256x256xbf16>, vector<8x256xf32> -> vector<8x256xf32>
    %c0_3 = arith.constant 0 : index
    %c0_4 = arith.constant 0 : index
    %3 = vector.load %arg3[%c0_3, %c0_4] : memref<1x256xf32, #tpu.memory_space<vmem>>, vector<1x256xf32>
    %4 = vector.broadcast %3 : vector<1x256xf32> to vector<8x256xf32>
    %5 = arith.addf %2, %4 : vector<8x256xf32>
    %6 = arith.truncf %5 : vector<8x256xf32> to vector<8x256xbf16>
    %c0_5 = arith.constant 0 : index
    %c0_6 = arith.constant 0 : index
    %7 = vector.load %arg4[%c0_5, %c0_6] : memref<256x256xbf16, #tpu.memory_space<vmem>>, vector<256x256xbf16>
    %cst_7 = arith.constant dense<0.000000e+00> : vector<8x256xf32>
    %8 = tpu.matmul %6, %7, %cst_7 {dimension_numbers = #tpu.dot_dimension_numbers<[1], [0], [0], [1], [0, 0, 1, 1], [], []>} : vector<8x256xbf16>, vector<256x256xbf16>, vector<8x256xf32> -> vector<8x256xf32>
    %c0_8 = arith.constant 0 : index
    %c0_9 = arith.constant 0 : index
    %9 = vector.load %arg5[%c0_8, %c0_9] : memref<1x256xf32, #tpu.memory_space<vmem>>, vector<1x256xf32>
    %10 = vector.broadcast %9 : vector<1x256xf32> to vector<8x256xf32>
    %11 = arith.addf %8, %10 : vector<8x256xf32>
    %12 = arith.truncf %11 : vector<8x256xf32> to vector<8x256xbf16>
    %c0_10 = arith.constant 0 : index
    %c0_11 = arith.constant 0 : index
    %13 = vector.load %arg6[%c0_10, %c0_11] : memref<256x128xbf16, #tpu.memory_space<vmem>>, vector<256x128xbf16>
    %cst_12 = arith.constant dense<0.000000e+00> : vector<8x128xf32>
    %14 = tpu.matmul %12, %13, %cst_12 {dimension_numbers = #tpu.dot_dimension_numbers<[1], [0], [0], [1], [0, 0, 1, 1], [], []>} : vector<8x256xbf16>, vector<256x128xbf16>, vector<8x128xf32> -> vector<8x128xf32>
    %c0_13 = arith.constant 0 : index
    %c0_14 = arith.constant 0 : index
    %15 = vector.load %arg7[%c0_13, %c0_14] : memref<1x128xf32, #tpu.memory_space<vmem>>, vector<1x128xf32>
    %16 = vector.broadcast %15 : vector<1x128xf32> to vector<8x128xf32>
    %17 = arith.addf %14, %16 : vector<8x128xf32>
    %18 = math.absf %17 : vector<8x128xf32>
    %cst_15 = arith.constant 0.000000e+00 : f32
    %19 = vector.broadcast %cst_15 : f32 to vector<8x128xf32>
    %20 = arith.subf %19, %18 : vector<8x128xf32>
    %21 = math.exp %20 : vector<8x128xf32>
    %cst_16 = arith.constant 1.000000e+00 : f32
    %22 = vector.broadcast %cst_16 : f32 to vector<8x128xf32>
    %23 = arith.addf %22, %21 : vector<8x128xf32>
    %24 = tpu.reciprocal %23 {approx = true} : vector<8x128xf32> -> vector<8x128xf32>
    %cst_17 = arith.constant 0.000000e+00 : f32
    %25 = vector.broadcast %cst_17 : f32 to vector<8x128xf32>
    %26 = arith.cmpf oge, %17, %25 : vector<8x128xf32>
    %cst_18 = arith.constant 1.000000e+00 : f32
    %27 = vector.broadcast %cst_18 : f32 to vector<8x128xf32>
    %28 = arith.subf %27, %24 : vector<8x128xf32>
    %29 = arith.select %26, %24, %28 : vector<8x128xi1>, vector<8x128xf32>
    %30 = arith.truncf %29 : vector<8x128xf32> to vector<8x128xbf16>
    %c0_19 = arith.constant 0 : index
    %c0_20 = arith.constant 0 : index
    %31 = vector.load %arg8[%c0_19, %c0_20] : memref<8x128xbf16, #tpu.memory_space<vmem>>, vector<8x128xbf16>
    tpu.vector_store %arg8[%c0_19, %c0_20], %30 {strides = array<i32>} : memref<8x128xbf16, #tpu.memory_space<vmem>>, vector<8x128xbf16>,
    return
  }
  func.func @transform_0(%arg0: i32) -> (i32, i32) {
    %c0_i32 = arith.constant 0 : i32
    %c0_i32_0 = arith.constant 0 : i32
    return %arg0, %c0_i32 : i32, i32
  }
  func.func @transform_1(%arg0: i32) -> (i32, i32) {
    %c0_i32 = arith.constant 0 : i32
    %c0_i32_0 = arith.constant 0 : i32
    %c0_i32_1 = arith.constant 0 : i32
    return %c0_i32, %c0_i32_0 : i32, i32
  }
  func.func @transform_2(%arg0: i32) -> (i32, i32) {
    %c0_i32 = arith.constant 0 : i32
    %c0_i32_0 = arith.constant 0 : i32
    %c0_i32_1 = arith.constant 0 : i32
    return %c0_i32, %c0_i32_0 : i32, i32
  }
  func.func @transform_3(%arg0: i32) -> (i32, i32) {
    %c0_i32 = arith.constant 0 : i32
    %c0_i32_0 = arith.constant 0 : i32
    %c0_i32_1 = arith.constant 0 : i32
    return %c0_i32, %c0_i32_0 : i32, i32
  }
  func.func @transform_4(%arg0: i32) -> (i32, i32) {
    %c0_i32 = arith.constant 0 : i32
    %c0_i32_0 = arith.constant 0 : i32
    %c0_i32_1 = arith.constant 0 : i32
    return %c0_i32, %c0_i32_0 : i32, i32
  }
  func.func @transform_5(%arg0: i32) -> (i32, i32) {
    %c0_i32 = arith.constant 0 : i32
    %c0_i32_0 = arith.constant 0 : i32
    %c0_i32_1 = arith.constant 0 : i32
    return %c0_i32, %c0_i32_0 : i32, i32
  }
  func.func @transform_6(%arg0: i32) -> (i32, i32) {
    %c0_i32 = arith.constant 0 : i32
    %c0_i32_0 = arith.constant 0 : i32
    %c0_i32_1 = arith.constant 0 : i32
    return %c0_i32, %c0_i32_0 : i32, i32
  }
  func.func @transform_7(%arg0: i32) -> (i32, i32) {
    %c0_i32 = arith.constant 0 : i32
    %c0_i32_0 = arith.constant 0 : i32
    return %arg0, %c0_i32 : i32, i32
  }
}

</mosaic_0001>

<llo_original>
// kernel: tpu_custom_call.1
$region0: #{tpu_custom_call.1}
  #allocation0 [shape = 'u32[]', space=smem, size = 0x4, offset = 0x4, fixed_abs, tag = 'smem constant byte address 0x4 - core index']
  #allocation1 [shape = 'u32[144,128]{1,0:T(1,128)}', space=vmem, size = 0x12000, scoped, tag = 'internal scratch']
  %s0 = inlined_call_operand.hbm [shape: bf16[8,256], index: 0, kind: input, shape index: {}]
  %s1 = inlined_call_operand.hbm [shape: bf16[256,256], index: 1, kind: input, shape index: {}]
  %s2 = inlined_call_operand.vmem [shape: f32[1,256], index: 2, kind: input, shape index: {}]
  %s3 = inlined_call_operand.hbm [shape: bf16[256,256], index: 3, kind: input, shape index: {}]
  %s4 = inlined_call_operand.vmem [shape: f32[1,256], index: 4, kind: input, shape index: {}]
  %s5 = inlined_call_operand.hbm [shape: bf16[256,128], index: 5, kind: input, shape index: {}]
  %s6 = inlined_call_operand.vmem [shape: f32[1,128], index: 6, kind: input, shape index: {}]
  %s7 = inlined_call_operand.hbm [shape: bf16[8,128], index: 7, kind: output, shape index: {}]
  %s8 = sld [smem:[#allocation0]]
  $region54: #{tpu_custom_call.1} parent=0
    _
  %s10 = ssub.s32 1, %s8
  %s11 = scalar_select 0, %s10, %s8
  $region1: #{tpu_custom_call.1} parent=0
    #allocation2 [shape = 'u8[4096]{0}', space=vmem, size = 0x1000, scoped, tag = 'input window, operand 0, single buffered']
    #allocation3 [shape = 's32[1]{0}', space=sflag, size = 0x4, scoped, tag = 'scoped memory for tpu_custom_call.1']
    #allocation4 [shape = 's32[1]{0}', space=sflag, size = 0x4, scoped, tag = 'scoped memory for tpu_custom_call.1']
    #allocation5 [shape = 'u8[131072]{0}', space=vmem, size = 0x20000, scoped, tag = 'input window, operand 1, single buffered']
    #allocation6 [shape = 's32[1]{0}', space=sflag, size = 0x4, scoped, tag = 'scoped memory for tpu_custom_call.1']
    #allocation7 [shape = 'u8[131072]{0}', space=vmem, size = 0x20000, scoped, tag = 'input window, operand 3, single buffered']
    #allocation8 [shape = 'u8[65536]{0}', space=vmem, size = 0x10000, scoped, tag = 'input window, operand 5, single buffered']
    #allocation9 [shape = 's32[1]{0}', space=sflag, size = 0x4, scoped, tag = 'scoped memory for tpu_custom_call.1']
    #allocation10 [shape = 'u8[2048]{0}', space=vmem, size = 0x800, scoped, tag = 'output window, operand 0, single buffered']
    %12 = vsyncpa [#allocation3], 0
    %13 = vsyncpa [#allocation6], 0
    %14 = vsyncpa [#allocation9], 0
    %15 = vsyncpa [#allocation4], 0
    // Predicated region
    $region2: #{tpu_custom_call.1} parent=1 // pred_check
      _
    $region3: #{tpu_custom_call.1} parent=1 // pred_check_branch
      %17 = sbr.rel (0) target = $region5
    $region4: #{tpu_custom_call.1} parent=1 // pred_region
      %s19 = ssub.s32 128, 128
      %20 = vsyncadd [#allocation3], %s19
      %s22 = sshll.u32 [#allocation2], 4
      %s23 = int_to_ptr.vmem [resolvable:$true] %s22
      %25 = dma.hbm_to_vmem [thread:$0]  %s0, 128, %s23, [#allocation3]
    $region5: #{tpu_custom_call.1} parent=1 // pred_fallthru
      _
    // Predicated region
    $region6: #{tpu_custom_call.1} parent=1 // pred_check
      _
    $region7: #{tpu_custom_call.1} parent=1 // pred_check_branch
      %27 = sbr.rel (0) target = $region9
    $region8: #{tpu_custom_call.1} parent=1 // pred_region
      %s29 = ssub.s32 4096, 4096
      %30 = vsyncadd [#allocation6], %s29
      %s31 = sshll.u32 [#allocation5], 4
      %s32 = int_to_ptr.vmem [resolvable:$true] %s31
      %37 = dma.hbm_to_vmem [thread:$0]  %s1, 4096, %s32, [#allocation6], 128, 128, 8
    $region9: #{tpu_custom_call.1} parent=1 // pred_fallthru
      _
    // Predicated region
    $region10: #{tpu_custom_call.1} parent=1 // pred_check
      _
    $region11: #{tpu_custom_call.1} parent=1 // pred_check_branch
      %39 = sbr.rel (0) target = $region13
    $region12: #{tpu_custom_call.1} parent=1 // pred_region
      _
    $region13: #{tpu_custom_call.1} parent=1 // pred_fallthru
      _
    // Predicated region
    $region14: #{tpu_custom_call.1} parent=1 // pred_check
      _
    $region15: #{tpu_custom_call.1} parent=1 // pred_check_branch
      %41 = sbr.rel (0) target = $region17
    $region16: #{tpu_custom_call.1} parent=1 // pred_region
      %s43 = ssub.s32 4096, 4096
      %44 = vsyncadd [#allocation6], %s43
      %s45 = sshll.u32 [#allocation7], 4
      %s46 = int_to_ptr.vmem [resolvable:$true] %s45
      %51 = dma.hbm_to_vmem [thread:$0]  %s3, 4096, %s46, [#allocation6], 128, 128, 8
    $region17: #{tpu_custom_call.1} parent=1 // pred_fallthru
      _
    // Predicated region
    $region18: #{tpu_custom_call.1} parent=1 // pred_check
      _
    $region19: #{tpu_custom_call.1} parent=1 // pred_check_branch
      %53 = sbr.rel (0) target = $region21
    $region20: #{tpu_custom_call.1} parent=1 // pred_region
      _
    $region21: #{tpu_custom_call.1} parent=1 // pred_fallthru
      _
    // Predicated region
    $region22: #{tpu_custom_call.1} parent=1 // pred_check
      _
    $region23: #{tpu_custom_call.1} parent=1 // pred_check_branch
      %55 = sbr.rel (0) target = $region25
    $region24: #{tpu_custom_call.1} parent=1 // pred_region
      %s57 = ssub.s32 2048, 2048
      %58 = vsyncadd [#allocation9], %s57
      %s59 = sshll.u32 [#allocation8], 4
      %s60 = int_to_ptr.vmem [resolvable:$true] %s59
      %65 = dma.hbm_to_vmem [thread:$0]  %s5, 2048, %s60, [#allocation9], 64, 64, 4
    $region25: #{tpu_custom_call.1} parent=1 // pred_fallthru
      _
    // Predicated region
    $region26: #{tpu_custom_call.1} parent=1 // pred_check
      _
    $region27: #{tpu_custom_call.1} parent=1 // pred_check_branch
      %67 = sbr.rel (0) target = $region29
    $region28: #{tpu_custom_call.1} parent=1 // pred_region
      _
    $region29: #{tpu_custom_call.1} parent=1 // pred_fallthru
      _
    // Predicated region
    $region30: #{tpu_custom_call.1} parent=1 // pred_check
      _
    $region31: #{tpu_custom_call.1} parent=1 // pred_check_branch
      %69 = sbr.rel (0) target = $region33
    $region32: #{tpu_custom_call.1} parent=1 // pred_region
      %70 = dma.done [#allocation3], 128
    $region33: #{tpu_custom_call.1} parent=1 // pred_fallthru
      _
    // Predicated region
    $region34: #{tpu_custom_call.1} parent=1 // pred_check
      _
    $region35: #{tpu_custom_call.1} parent=1 // pred_check_branch
      %72 = sbr.rel (0) target = $region37
    $region36: #{tpu_custom_call.1} parent=1 // pred_region
      %73 = dma.done [#allocation6], 4096
    $region37: #{tpu_custom_call.1} parent=1 // pred_fallthru
      _
    // Predicated region
    $region38: #{tpu_custom_call.1} parent=1 // pred_check
      _
    $region39: #{tpu_custom_call.1} parent=1 // pred_check_branch
      %75 = sbr.rel (0) target = $region41
    $region40: #{tpu_custom_call.1} parent=1 // pred_region
      %76 = dma.done [#allocation6], 4096
    $region41: #{tpu_custom_call.1} parent=1 // pred_fallthru
      _
    // Predicated region
    $region42: #{tpu_custom_call.1} parent=1 // pred_check
      _
    $region43: #{tpu_custom_call.1} parent=1 // pred_check_branch
      %78 = sbr.rel (0) target = $region45
    $region44: #{tpu_custom_call.1} parent=1 // pred_region
      %79 = dma.done [#allocation9], 2048
    $region45: #{tpu_custom_call.1} parent=1 // pred_fallthru
      _
    %v81 = vld [vmem:[#allocation2] sm:$0xff]
    %v82 = vld [vmem:[#allocation5] sm:$0xff]
    %v83 = vld [vmem:[#allocation5 + $0x8] sm:$0xff]
    %v84 = vld [vmem:[#allocation5 + $0x10] sm:$0xff]
    %v85 = vld [vmem:[#allocation5 + $0x18] sm:$0xff]
    %v86 = vld [vmem:[#allocation5 + $0x20] sm:$0xff]
    %v87 = vld [vmem:[#allocation5 + $0x28] sm:$0xff]
    %v88 = vld [vmem:[#allocation5 + $0x30] sm:$0xff]
    %v89 = vld [vmem:[#allocation5 + $0x38] sm:$0xff]
    %v90 = vld [vmem:[#allocation5 + $0x40] sm:$0xff]
    %v91 = vld [vmem:[#allocation5 + $0x48] sm:$0xff]
    %v92 = vld [vmem:[#allocation5 + $0x50] sm:$0xff]
    %v93 = vld [vmem:[#allocation5 + $0x58] sm:$0xff]
    %v94 = vld [vmem:[#allocation5 + $0x60] sm:$0xff]
    %v95 = vld [vmem:[#allocation5 + $0x68] sm:$0xff]
    %v96 = vld [vmem:[#allocation5 + $0x70] sm:$0xff]
    %v97 = vld [vmem:[#allocation5 + $0x78] sm:$0xff]
    %v98 = vld [vmem:[#allocation5 + $0x80] sm:$0xff]
    %v99 = vld [vmem:[#allocation5 + $0x88] sm:$0xff]
    %v100 = vld [vmem:[#allocation5 + $0x90] sm:$0xff]
    %v101 = vld [vmem:[#allocation5 + $0x98] sm:$0xff]
    %v102 = vld [vmem:[#allocation5 + $0xa0] sm:$0xff]
    %v103 = vld [vmem:[#allocation5 + $0xa8] sm:$0xff]
    %v104 = vld [vmem:[#allocation5 + $0xb0] sm:$0xff]
    %v105 = vld [vmem:[#allocation5 + $0xb8] sm:$0xff]
    %v106 = vld [vmem:[#allocation5 + $0xc0] sm:$0xff]
    %v107 = vld [vmem:[#allocation5 + $0xc8] sm:$0xff]
    %v108 = vld [vmem:[#allocation5 + $0xd0] sm:$0xff]
    %v109 = vld [vmem:[#allocation5 + $0xd8] sm:$0xff]
    %v110 = vld [vmem:[#allocation5 + $0xe0] sm:$0xff]
    %v111 = vld [vmem:[#allocation5 + $0xe8] sm:$0xff]
    %v112 = vld [vmem:[#allocation5 + $0xf0] sm:$0xff]
    %v113 = vld [vmem:[#allocation5 + $0xf8] sm:$0xff]
    %v114 = vld [vmem:[%s2] sm:$0x3]
    %v116 = vlaneseq
    %v117 = vshrl.u32 %v116, 7
    %v118 = vsub.s32 0, %v117
    %v119 = vrot.slane %v114, %v118
    %v120 = vlaneseq
    %v121 = vshrl.u32 %v120, 7
    %v122 = vsub.s32 1, %v121
    %v123 = vrot.slane %v114, %v122
    %v127 = vunpack.c.l.b16 %v81
    %v128 = vunpack.c.h.b16 %v81
    %v129 = vpack.c.b16 %v127, %v127
    %v130 = vpack.c.b16 %v128, %v128
    %v165 = vunpack.c.l.b16 %v82
    %v166 = vunpack.c.h.b16 %v82
    %v167 = vunpack.c.l.b16 %v83
    %v168 = vunpack.c.h.b16 %v83
    %v169 = vunpack.c.l.b16 %v84
    %v170 = vunpack.c.h.b16 %v84
    %v171 = vunpack.c.l.b16 %v85
    %v172 = vunpack.c.h.b16 %v85
    %v173 = vunpack.c.l.b16 %v86
    %v174 = vunpack.c.h.b16 %v86
    %v175 = vunpack.c.l.b16 %v87
    %v176 = vunpack.c.h.b16 %v87
    %v177 = vunpack.c.l.b16 %v88
    %v178 = vunpack.c.h.b16 %v88
    %v179 = vunpack.c.l.b16 %v89
    %v180 = vunpack.c.h.b16 %v89
    %v181 = vunpack.c.l.b16 %v90
    %v182 = vunpack.c.h.b16 %v90
    %v183 = vunpack.c.l.b16 %v91
    %v184 = vunpack.c.h.b16 %v91
    %v185 = vunpack.c.l.b16 %v92
    %v186 = vunpack.c.h.b16 %v92
    %v187 = vunpack.c.l.b16 %v93
    %v188 = vunpack.c.h.b16 %v93
    %v189 = vunpack.c.l.b16 %v94
    %v190 = vunpack.c.h.b16 %v94
    %v191 = vunpack.c.l.b16 %v95
    %v192 = vunpack.c.h.b16 %v95
    %v193 = vunpack.c.l.b16 %v96
    %v194 = vunpack.c.h.b16 %v96
    %v195 = vunpack.c.l.b16 %v97
    %v196 = vunpack.c.h.b16 %v97
    %v197 = vunpack.c.l.b16 %v98
    %v198 = vunpack.c.h.b16 %v98
    %v199 = vunpack.c.l.b16 %v99
    %v200 = vunpack.c.h.b16 %v99
    %v201 = vunpack.c.l.b16 %v100
    %v202 = vunpack.c.h.b16 %v100
    %v203 = vunpack.c.l.b16 %v101
    %v204 = vunpack.c.h.b16 %v101
    %v205 = vunpack.c.l.b16 %v102
    %v206 = vunpack.c.h.b16 %v102
    %v207 = vunpack.c.l.b16 %v103
    %v208 = vunpack.c.h.b16 %v103
    %v209 = vunpack.c.l.b16 %v104
    %v210 = vunpack.c.h.b16 %v104
    %v211 = vunpack.c.l.b16 %v105
    %v212 = vunpack.c.h.b16 %v105
    %v213 = vunpack.c.l.b16 %v106
    %v214 = vunpack.c.h.b16 %v106
    %v215 = vunpack.c.l.b16 %v107
    %v216 = vunpack.c.h.b16 %v107
    %v217 = vunpack.c.l.b16 %v108
    %v218 = vunpack.c.h.b16 %v108
    %v219 = vunpack.c.l.b16 %v109
    %v220 = vunpack.c.h.b16 %v109
    %v221 = vunpack.c.l.b16 %v110
    %v222 = vunpack.c.h.b16 %v110
    %v223 = vunpack.c.l.b16 %v111
    %v224 = vunpack.c.h.b16 %v111
    %v225 = vunpack.c.l.b16 %v112
    %v226 = vunpack.c.h.b16 %v112
    %v227 = vunpack.c.l.b16 %v113
    %v228 = vunpack.c.h.b16 %v113
    %v229 = vpack.c.b16 %v167, %v165
    %v230 = vpack.c.b16 %v168, %v166
    %v231 = vpack.c.b16 %v171, %v169
    %v232 = vpack.c.b16 %v172, %v170
    %v233 = vpack.c.b16 %v175, %v173
    %v234 = vpack.c.b16 %v176, %v174
    %v235 = vpack.c.b16 %v179, %v177
    %v236 = vpack.c.b16 %v180, %v178
    %v237 = vpack.c.b16 %v183, %v181
    %v238 = vpack.c.b16 %v184, %v182
    %v239 = vpack.c.b16 %v187, %v185
    %v240 = vpack.c.b16 %v188, %v186
    %v241 = vpack.c.b16 %v191, %v189
    %v242 = vpack.c.b16 %v192, %v190
    %v243 = vpack.c.b16 %v195, %v193
    %v244 = vpack.c.b16 %v196, %v194
    %v245 = vpack.c.b16 %v199, %v197
    %v246 = vpack.c.b16 %v200, %v198
    %v247 = vpack.c.b16 %v203, %v201
    %v248 = vpack.c.b16 %v204, %v202
    %v249 = vpack.c.b16 %v207, %v205
    %v250 = vpack.c.b16 %v208, %v206
    %v251 = vpack.c.b16 %v211, %v209
    %v252 = vpack.c.b16 %v212, %v210
    %v253 = vpack.c.b16 %v215, %v213
    %v254 = vpack.c.b16 %v216, %v214
    %v255 = vpack.c.b16 %v219, %v217
    %v256 = vpack.c.b16 %v220, %v218
    %v257 = vpack.c.b16 %v223, %v221
    %v258 = vpack.c.b16 %v224, %v222
    %v259 = vpack.c.b16 %v227, %v225
    %v260 = vpack.c.b16 %v228, %v226
    %293 = vmatprep.subr.bf16.mxu0 %v230
    %294 = vmatpush1.bf16.msra.mxu0 %v229
    %295 = vmatprep.subr.bf16.mxu0 %v232
    %296 = vmatpush1.bf16.msra.mxu0 %v231
    %297 = vmatprep.subr.bf16.mxu0 %v234
    %298 = vmatpush1.bf16.msra.mxu0 %v233
    %299 = vmatprep.subr.bf16.mxu0 %v236
    %300 = vmatpush1.bf16.msra.mxu0 %v235
    %301 = vmatprep.subr.bf16.mxu0 %v238
    %302 = vmatpush1.bf16.msra.mxu0 %v237
    %303 = vmatprep.subr.bf16.mxu0 %v240
    %304 = vmatpush1.bf16.msra.mxu0 %v239
    %305 = vmatprep.subr.bf16.mxu0 %v242
    %306 = vmatpush1.bf16.msra.mxu0 %v241
    %307 = vmatprep.subr.bf16.mxu0 %v244
    %308 = vmatpush1.bf16.msra.mxu0 %v243
    %309 = vmatprep.subr.bf16.mxu0 %v246
    %310 = vmatpush1.bf16.msra.mxu0 %v245
    %311 = vmatprep.subr.bf16.mxu0 %v248
    %312 = vmatpush1.bf16.msra.mxu0 %v247
    %313 = vmatprep.subr.bf16.mxu0 %v250
    %314 = vmatpush1.bf16.msra.mxu0 %v249
    %315 = vmatprep.subr.bf16.mxu0 %v252
    %316 = vmatpush1.bf16.msra.mxu0 %v251
    %317 = vmatprep.subr.bf16.mxu0 %v254
    %318 = vmatpush1.bf16.msra.mxu0 %v253
    %319 = vmatprep.subr.bf16.mxu0 %v256
    %320 = vmatpush1.bf16.msra.mxu0 %v255
    %321 = vmatprep.subr.bf16.mxu0 %v258
    %322 = vmatpush1.bf16.msra.mxu0 %v257
    %323 = vmatprep.subr.bf16.mxu0 %v260
    %324 = vmatpush1.bf16.msra.mxu0 %v259
    %325 = vmatprep.mubr.bf16.mxu0 %v130
    %326 = vmatmul.mubr.bf16.gmra.mrb[0].mxu0 %v129
    %v327 = vpop.f32.mrb[0].mxu0
    %v328 = vadd.f32 %v119, %v327
    %v329 = vpop.f32.mrb[0].mxu0
    %v330 = vadd.f32 %v123, %v329
    %v331 = vpop.f32.mrb[0].mxu0
    %v332 = vpop.f32.mrb[0].mxu0
    %333 = vdwg.mxu0
    %v334 = vpack.c.bf16 %v328, %v328
    %v335 = vpack.c.bf16 %v330, %v330
    %v336 = vld [vmem:[#allocation7] sm:$0xff]
    %v337 = vld [vmem:[#allocation7 + $0x8] sm:$0xff]
    %v338 = vld [vmem:[#allocation7 + $0x10] sm:$0xff]
    %v339 = vld [vmem:[#allocation7 + $0x18] sm:$0xff]
    %v340 = vld [vmem:[#allocation7 + $0x20] sm:$0xff]
    %v341 = vld [vmem:[#allocation7 + $0x28] sm:$0xff]
    %v342 = vld [vmem:[#allocation7 + $0x30] sm:$0xff]
    %v343 = vld [vmem:[#allocation7 + $0x38] sm:$0xff]
    %v344 = vld [vmem:[#allocation7 + $0x40] sm:$0xff]
    %v345 = vld [vmem:[#allocation7 + $0x48] sm:$0xff]
    %v346 = vld [vmem:[#allocation7 + $0x50] sm:$0xff]
    %v347 = vld [vmem:[#allocation7 + $0x58] sm:$0xff]
    %v348 = vld [vmem:[#allocation7 + $0x60] sm:$0xff]
    %v349 = vld [vmem:[#allocation7 + $0x68] sm:$0xff]
    %v350 = vld [vmem:[#allocation7 + $0x70] sm:$0xff]
    %v351 = vld [vmem:[#allocation7 + $0x78] sm:$0xff]
    %v352 = vld [vmem:[#allocation7 + $0x80] sm:$0xff]
    %v353 = vld [vmem:[#allocation7 + $0x88] sm:$0xff]
    %v354 = vld [vmem:[#allocation7 + $0x90] sm:$0xff]
    %v355 = vld [vmem:[#allocation7 + $0x98] sm:$0xff]
    %v356 = vld [vmem:[#allocation7 + $0xa0] sm:$0xff]
    %v357 = vld [vmem:[#allocation7 + $0xa8] sm:$0xff]
    %v358 = vld [vmem:[#allocation7 + $0xb0] sm:$0xff]
    %v359 = vld [vmem:[#allocation7 + $0xb8] sm:$0xff]
    %v360 = vld [vmem:[#allocation7 + $0xc0] sm:$0xff]
    %v361 = vld [vmem:[#allocation7 + $0xc8] sm:$0xff]
    %v362 = vld [vmem:[#allocation7 + $0xd0] sm:$0xff]
    %v363 = vld [vmem:[#allocation7 + $0xd8] sm:$0xff]
    %v364 = vld [vmem:[#allocation7 + $0xe0] sm:$0xff]
    %v365 = vld [vmem:[#allocation7 + $0xe8] sm:$0xff]
    %v366 = vld [vmem:[#allocation7 + $0xf0] sm:$0xff]
    %v367 = vld [vmem:[#allocation7 + $0xf8] sm:$0xff]
    %v368 = vld [vmem:[%s4] sm:$0x3]
    %v370 = vlaneseq
    %v371 = vshrl.u32 %v370, 7
    %v372 = vsub.s32 0, %v371
    %v373 = vrot.slane %v368, %v372
    %v374 = vlaneseq
    %v375 = vshrl.u32 %v374, 7
    %v376 = vsub.s32 1, %v375
    %v377 = vrot.slane %v368, %v376
    %v412 = vunpack.c.l.b16 %v336
    %v413 = vunpack.c.h.b16 %v336
    %v414 = vunpack.c.l.b16 %v337
    %v415 = vunpack.c.h.b16 %v337
    %v416 = vunpack.c.l.b16 %v338
    %v417 = vunpack.c.h.b16 %v338
    %v418 = vunpack.c.l.b16 %v339
    %v419 = vunpack.c.h.b16 %v339
    %v420 = vunpack.c.l.b16 %v340
    %v421 = vunpack.c.h.b16 %v340
    %v422 = vunpack.c.l.b16 %v341
    %v423 = vunpack.c.h.b16 %v341
    %v424 = vunpack.c.l.b16 %v342
    %v425 = vunpack.c.h.b16 %v342
    %v426 = vunpack.c.l.b16 %v343
    %v427 = vunpack.c.h.b16 %v343
    %v428 = vunpack.c.l.b16 %v344
    %v429 = vunpack.c.h.b16 %v344
    %v430 = vunpack.c.l.b16 %v345
    %v431 = vunpack.c.h.b16 %v345
    %v432 = vunpack.c.l.b16 %v346
    %v433 = vunpack.c.h.b16 %v346
    %v434 = vunpack.c.l.b16 %v347
    %v435 = vunpack.c.h.b16 %v347
    %v436 = vunpack.c.l.b16 %v348
    %v437 = vunpack.c.h.b16 %v348
    %v438 = vunpack.c.l.b16 %v349
    %v439 = vunpack.c.h.b16 %v349
    %v440 = vunpack.c.l.b16 %v350
    %v441 = vunpack.c.h.b16 %v350
    %v442 = vunpack.c.l.b16 %v351
    %v443 = vunpack.c.h.b16 %v351
    %v444 = vunpack.c.l.b16 %v352
    %v445 = vunpack.c.h.b16 %v352
    %v446 = vunpack.c.l.b16 %v353
    %v447 = vunpack.c.h.b16 %v353
    %v448 = vunpack.c.l.b16 %v354
    %v449 = vunpack.c.h.b16 %v354
    %v450 = vunpack.c.l.b16 %v355
    %v451 = vunpack.c.h.b16 %v355
    %v452 = vunpack.c.l.b16 %v356
    %v453 = vunpack.c.h.b16 %v356
    %v454 = vunpack.c.l.b16 %v357
    %v455 = vunpack.c.h.b16 %v357
    %v456 = vunpack.c.l.b16 %v358
    %v457 = vunpack.c.h.b16 %v358
    %v458 = vunpack.c.l.b16 %v359
    %v459 = vunpack.c.h.b16 %v359
    %v460 = vunpack.c.l.b16 %v360
    %v461 = vunpack.c.h.b16 %v360
    %v462 = vunpack.c.l.b16 %v361
    %v463 = vunpack.c.h.b16 %v361
    %v464 = vunpack.c.l.b16 %v362
    %v465 = vunpack.c.h.b16 %v362
    %v466 = vunpack.c.l.b16 %v363
    %v467 = vunpack.c.h.b16 %v363
    %v468 = vunpack.c.l.b16 %v364
    %v469 = vunpack.c.h.b16 %v364
    %v470 = vunpack.c.l.b16 %v365
    %v471 = vunpack.c.h.b16 %v365
    %v472 = vunpack.c.l.b16 %v366
    %v473 = vunpack.c.h.b16 %v366
    %v474 = vunpack.c.l.b16 %v367
    %v475 = vunpack.c.h.b16 %v367
    %v476 = vpack.c.b16 %v414, %v412
    %v477 = vpack.c.b16 %v415, %v413
    %v478 = vpack.c.b16 %v418, %v416
    %v479 = vpack.c.b16 %v419, %v417
    %v480 = vpack.c.b16 %v422, %v420
    %v481 = vpack.c.b16 %v423, %v421
    %v482 = vpack.c.b16 %v426, %v424
    %v483 = vpack.c.b16 %v427, %v425
    %v484 = vpack.c.b16 %v430, %v428
    %v485 = vpack.c.b16 %v431, %v429
    %v486 = vpack.c.b16 %v434, %v432
    %v487 = vpack.c.b16 %v435, %v433
    %v488 = vpack.c.b16 %v438, %v436
    %v489 = vpack.c.b16 %v439, %v437
    %v490 = vpack.c.b16 %v442, %v440
    %v491 = vpack.c.b16 %v443, %v441
    %v492 = vpack.c.b16 %v446, %v444
    %v493 = vpack.c.b16 %v447, %v445
    %v494 = vpack.c.b16 %v450, %v448
    %v495 = vpack.c.b16 %v451, %v449
    %v496 = vpack.c.b16 %v454, %v452
    %v497 = vpack.c.b16 %v455, %v453
    %v498 = vpack.c.b16 %v458, %v456
    %v499 = vpack.c.b16 %v459, %v457
    %v500 = vpack.c.b16 %v462, %v460
    %v501 = vpack.c.b16 %v463, %v461
    %v502 = vpack.c.b16 %v466, %v464
    %v503 = vpack.c.b16 %v467, %v465
    %v504 = vpack.c.b16 %v470, %v468
    %v505 = vpack.c.b16 %v471, %v469
    %v506 = vpack.c.b16 %v474, %v472
    %v507 = vpack.c.b16 %v475, %v473
    %540 = vmatprep.subr.bf16.mxu0 %v477
    %541 = vmatpush1.bf16.msra.mxu0 %v476
    %542 = vmatprep.subr.bf16.mxu0 %v479
    %543 = vmatpush1.bf16.msra.mxu0 %v478
    %544 = vmatprep.subr.bf16.mxu0 %v481
    %545 = vmatpush1.bf16.msra.mxu0 %v480
    %546 = vmatprep.subr.bf16.mxu0 %v483
    %547 = vmatpush1.bf16.msra.mxu0 %v482
    %548 = vmatprep.subr.bf16.mxu0 %v485
    %549 = vmatpush1.bf16.msra.mxu0 %v484
    %550 = vmatprep.subr.bf16.mxu0 %v487
    %551 = vmatpush1.bf16.msra.mxu0 %v486
    %552 = vmatprep.subr.bf16.mxu0 %v489
    %553 = vmatpush1.bf16.msra.mxu0 %v488
    %554 = vmatprep.subr.bf16.mxu0 %v491
    %555 = vmatpush1.bf16.msra.mxu0 %v490
    %556 = vmatprep.subr.bf16.mxu0 %v493
    %557 = vmatpush1.bf16.msra.mxu0 %v492
    %558 = vmatprep.subr.bf16.mxu0 %v495
    %559 = vmatpush1.bf16.msra.mxu0 %v494
    %560 = vmatprep.subr.bf16.mxu0 %v497
    %561 = vmatpush1.bf16.msra.mxu0 %v496
    %562 = vmatprep.subr.bf16.mxu0 %v499
    %563 = vmatpush1.bf16.msra.mxu0 %v498
    %564 = vmatprep.subr.bf16.mxu0 %v501
    %565 = vmatpush1.bf16.msra.mxu0 %v500
    %566 = vmatprep.subr.bf16.mxu0 %v503
    %567 = vmatpush1.bf16.msra.mxu0 %v502
    %568 = vmatprep.subr.bf16.mxu0 %v505
    %569 = vmatpush1.bf16.msra.mxu0 %v504
    %570 = vmatprep.subr.bf16.mxu0 %v507
    %571 = vmatpush1.bf16.msra.mxu0 %v506
    %572 = vmatprep.mubr.bf16.mxu0 %v335
    %573 = vmatmul.mubr.bf16.gmra.mrb[0].mxu0 %v334
    %v574 = vpop.f32.mrb[0].mxu0
    %v575 = vadd.f32 %v373, %v574
    %v576 = vpop.f32.mrb[0].mxu0
    %v577 = vadd.f32 %v377, %v576
    %v578 = vpop.f32.mrb[0].mxu0
    %v579 = vpop.f32.mrb[0].mxu0
    %580 = vdwg.mxu0
    %v581 = vpack.c.bf16 %v575, %v575
    %v582 = vpack.c.bf16 %v577, %v577
    %v583 = vld [vmem:[#allocation8] sm:$0xf]
    %v584 = vld [vmem:[#allocation8 + $0x4] sm:$0xf]
    %v585 = vld [vmem:[#allocation8 + $0x8] sm:$0xf]
    %v586 = vld [vmem:[#allocation8 + $0xc] sm:$0xf]
    %v587 = vld [vmem:[#allocation8 + $0x10] sm:$0xf]
    %v588 = vld [vmem:[#allocation8 + $0x14] sm:$0xf]
    %v589 = vld [vmem:[#allocation8 + $0x18] sm:$0xf]
    %v590 = vld [vmem:[#allocation8 + $0x1c] sm:$0xf]
    %v591 = vld [vmem:[#allocation8 + $0x20] sm:$0xf]
    %v592 = vld [vmem:[#allocation8 + $0x24] sm:$0xf]
    %v593 = vld [vmem:[#allocation8 + $0x28] sm:$0xf]
    %v594 = vld [vmem:[#allocation8 + $0x2c] sm:$0xf]
    %v595 = vld [vmem:[#allocation8 + $0x30] sm:$0xf]
    %v596 = vld [vmem:[#allocation8 + $0x34] sm:$0xf]
    %v597 = vld [vmem:[#allocation8 + $0x38] sm:$0xf]
    %v598 = vld [vmem:[#allocation8 + $0x3c] sm:$0xf]
    %v599 = vld [vmem:[#allocation8 + $0x40] sm:$0xf]
    %v600 = vld [vmem:[#allocation8 + $0x44] sm:$0xf]
    %v601 = vld [vmem:[#allocation8 + $0x48] sm:$0xf]
    %v602 = vld [vmem:[#allocation8 + $0x4c] sm:$0xf]
    %v603 = vld [vmem:[#allocation8 + $0x50] sm:$0xf]
    %v604 = vld [vmem:[#allocation8 + $0x54] sm:$0xf]
    %v605 = vld [vmem:[#allocation8 + $0x58] sm:$0xf]
    %v606 = vld [vmem:[#allocation8 + $0x5c] sm:$0xf]
    %v607 = vld [vmem:[#allocation8 + $0x60] sm:$0xf]
    %v608 = vld [vmem:[#allocation8 + $0x64] sm:$0xf]
    %v609 = vld [vmem:[#allocation8 + $0x68] sm:$0xf]
    %v610 = vld [vmem:[#allocation8 + $0x6c] sm:$0xf]
    %v611 = vld [vmem:[#allocation8 + $0x70] sm:$0xf]
    %v612 = vld [vmem:[#allocation8 + $0x74] sm:$0xf]
    %v613 = vld [vmem:[#allocation8 + $0x78] sm:$0xf]
    %v614 = vld [vmem:[#allocation8 + $0x7c] sm:$0xf]
    %v615 = vld [vmem:[%s6] sm:$0x1]
    %v617 = vlaneseq
    %v618 = vshrl.u32 %v617, 7
    %v619 = vsub.s32 0, %v618
    %v620 = vrot.slane %v615, %v619
    %v654 = vunpack.c.l.b16 %v583
    %v655 = vunpack.c.l.b16 %v584
    %v656 = vunpack.c.l.b16 %v585
    %v657 = vunpack.c.l.b16 %v586
    %v658 = vunpack.c.l.b16 %v587
    %v659 = vunpack.c.l.b16 %v588
    %v660 = vunpack.c.l.b16 %v589
    %v661 = vunpack.c.l.b16 %v590
    %v662 = vunpack.c.l.b16 %v591
    %v663 = vunpack.c.l.b16 %v592
    %v664 = vunpack.c.l.b16 %v593
    %v665 = vunpack.c.l.b16 %v594
    %v666 = vunpack.c.l.b16 %v595
    %v667 = vunpack.c.l.b16 %v596
    %v668 = vunpack.c.l.b16 %v597
    %v669 = vunpack.c.l.b16 %v598
    %v670 = vunpack.c.l.b16 %v599
    %v671 = vunpack.c.l.b16 %v600
    %v672 = vunpack.c.l.b16 %v601
    %v673 = vunpack.c.l.b16 %v602
    %v674 = vunpack.c.l.b16 %v603
    %v675 = vunpack.c.l.b16 %v604
    %v676 = vunpack.c.l.b16 %v605
    %v677 = vunpack.c.l.b16 %v606
    %v678 = vunpack.c.l.b16 %v607
    %v679 = vunpack.c.l.b16 %v608
    %v680 = vunpack.c.l.b16 %v609
    %v681 = vunpack.c.l.b16 %v610
    %v682 = vunpack.c.l.b16 %v611
    %v683 = vunpack.c.l.b16 %v612
    %v684 = vunpack.c.l.b16 %v613
    %v685 = vunpack.c.l.b16 %v614
    %v686 = vpack.c.b16 %v655, %v654
    %v687 = vpack.c.b16 %v657, %v656
    %v688 = vpack.c.b16 %v659, %v658
    %v689 = vpack.c.b16 %v661, %v660
    %v690 = vpack.c.b16 %v663, %v662
    %v691 = vpack.c.b16 %v665, %v664
    %v692 = vpack.c.b16 %v667, %v666
    %v693 = vpack.c.b16 %v669, %v668
    %v694 = vpack.c.b16 %v671, %v670
    %v695 = vpack.c.b16 %v673, %v672
    %v696 = vpack.c.b16 %v675, %v674
    %v697 = vpack.c.b16 %v677, %v676
    %v698 = vpack.c.b16 %v679, %v678
    %v699 = vpack.c.b16 %v681, %v680
    %v700 = vpack.c.b16 %v683, %v682
    %v701 = vpack.c.b16 %v685, %v684
    %718 = vmatprep.subr.bf16.mxu0 0
    %719 = vmatpush1.bf16.msra.mxu0 %v686
    %720 = vmatprep.subr.bf16.mxu0 0
    %721 = vmatpush1.bf16.msra.mxu0 %v687
    %722 = vmatprep.subr.bf16.mxu0 0
    %723 = vmatpush1.bf16.msra.mxu0 %v688
    %724 = vmatprep.subr.bf16.mxu0 0
    %725 = vmatpush1.bf16.msra.mxu0 %v689
    %726 = vmatprep.subr.bf16.mxu0 0
    %727 = vmatpush1.bf16.msra.mxu0 %v690
    %728 = vmatprep.subr.bf16.mxu0 0
    %729 = vmatpush1.bf16.msra.mxu0 %v691
    %730 = vmatprep.subr.bf16.mxu0 0
    %731 = vmatpush1.bf16.msra.mxu0 %v692
    %732 = vmatprep.subr.bf16.mxu0 0
    %733 = vmatpush1.bf16.msra.mxu0 %v693
    %734 = vmatprep.subr.bf16.mxu0 0
    %735 = vmatpush1.bf16.msra.mxu0 %v694
    %736 = vmatprep.subr.bf16.mxu0 0
    %737 = vmatpush1.bf16.msra.mxu0 %v695
    %738 = vmatprep.subr.bf16.mxu0 0
    %739 = vmatpush1.bf16.msra.mxu0 %v696
    %740 = vmatprep.subr.bf16.mxu0 0
    %741 = vmatpush1.bf16.msra.mxu0 %v697
    %742 = vmatprep.subr.bf16.mxu0 0
    %743 = vmatpush1.bf16.msra.mxu0 %v698
    %744 = vmatprep.subr.bf16.mxu0 0
    %745 = vmatpush1.bf16.msra.mxu0 %v699
    %746 = vmatprep.subr.bf16.mxu0 0
    %747 = vmatpush1.bf16.msra.mxu0 %v700
    %748 = vmatprep.subr.bf16.mxu0 0
    %749 = vmatpush1.bf16.msra.mxu0 %v701
    %750 = vmatprep.mubr.bf16.mxu0 %v582
    %751 = vmatmul.mubr.bf16.gmra.mrb[0].mxu0 %v581
    %v752 = vpop.f32.mrb[0].mxu0
    %v753 = vadd.f32 %v620, %v752
    %v754 = vpop.f32.mrb[0].mxu0
    %v755 = vpop.f32.mrb[0].mxu0
    %v756 = vpop.f32.mrb[0].mxu0
    %757 = vdwg.mxu0
    %v758 = vand.u32 2147483647, %v753
    %v759 = vsub.f32 0.0, %v758
    %v760 = vmul.f32 %v759, 1.442695
    %v761 = vpow.pop %v760
    %v762 = vadd.f32 %v761, 1.0
    %v763 = vrcp.pop %v762
    %vm764 = vcmp.ge.f32.partialorder %v753, 0.0
    %v765 = vsub.f32 1.0, %v763
    %v766 = vsel %vm764, %v763, %v765
    %v767 = vpack.c.bf16 %v766, %v766
    %768 = vst [vmem:[#allocation10] sm:$0xf] %v767
    // Predicated region
    $region46: #{tpu_custom_call.1} parent=1 // pred_check
      _
    $region47: #{tpu_custom_call.1} parent=1 // pred_check_branch
      %770 = sbr.rel (0) target = $region49
    $region48: #{tpu_custom_call.1} parent=1 // pred_region
      %s772 = ssub.s32 64, 64
      %773 = vsyncadd [#allocation4], %s772
      %s775 = sshll.u32 [#allocation10], 4
      %s776 = int_to_ptr.vmem [resolvable:$true] %s775
      %778 = dma.vmem_to_hbm [thread:$0]  %s776, 64, %s7, [#allocation4]
    $region49: #{tpu_custom_call.1} parent=1 // pred_fallthru
      _
    // Predicated region
    $region50: #{tpu_custom_call.1} parent=1 // pred_check
      _
    $region51: #{tpu_custom_call.1} parent=1 // pred_check_branch
      %780 = sbr.rel (0) target = $region53
    $region52: #{tpu_custom_call.1} parent=1 // pred_region
      %781 = dma.done [#allocation4], 64
    $region53: #{tpu_custom_call.1} parent=1 // pred_fallthru
      _
    %782 = vsyncpa [#allocation3], 1
    %783 = vsyncpa [#allocation6], 1
    %784 = vsyncpa [#allocation9], 1
    %785 = vsyncpa [#allocation4], 1

</llo_original>
